<compile_context>
chip_gen: v5e
topology: v5e:2x2
jax: 0.10.0
libtpu: 0.0.40
codegen_flags: <defaults>
</compile_context>

<pallas_src>
import jax
import jax.numpy as jnp
from jax.experimental import pallas as pl
from jax.experimental.pallas import tpu as pltpu


def prompt_learner_kernel(x_ref, w1_ref, b1_ref, w2_ref, b2_ref,
                          ctx_ref, template_ref, out_ref):
    bt, n_cls, seq, ctx_dim = out_ref.shape        # batch rows in this grid step
    n_ctx = ctx_ref.shape[0]

    # (1) Row-0-aligned bulk copy of the batch-invariant template (prefix row 0,
    #     placeholder ctx rows, suffix rows 1+n_ctx..seq-1) into the whole
    #     output block.  One whole-block store, native dtype, no cast.
    out_ref[...] = jnp.broadcast_to(template_ref[...][None],
                                    (bt, n_cls, seq, ctx_dim))

    # (2) meta_net (Linear -> ReLU -> Linear) for this block's batch rows in one
    #     batched MXU pass.  im_features is resident; slice this step's rows.
    b0 = pl.multiple_of(pl.program_id(0) * bt, bt)
    x = x_ref[pl.ds(b0, bt), :]                                            # (bt, vis_dim)
    h = jnp.maximum(
        jnp.dot(x, w1_ref[...], preferred_element_type=jnp.float32) + b1_ref[...],
        0.0)                                                               # (bt, hid)
    bias = (jnp.dot(h, w2_ref[...], preferred_element_type=jnp.float32)
            + b2_ref[...])                                                 # (bt, ctx_dim)

    # ctx_shifted = ctx + bias (broadcast over the n_ctx rows), cast only these
    # 4/77 rows back to the output dtype.
    ctx_shifted = (ctx_ref[...].astype(jnp.float32)[None, :, :]
                   + bias[:, None, :]).astype(out_ref.dtype)               # (bt, n_ctx, ctx_dim)

    # (3) Overwrite only the n_ctx ctx rows with one whole-block store over
    #     (bt, n_cls, ...).  These are the only partial-tile stores left.
    out_ref[:, :, 1:1 + n_ctx, :] = jnp.broadcast_to(
        ctx_shifted[:, None, :, :], (bt, n_cls, n_ctx, ctx_dim))


def prompt_learner_forward(im_features, w1, b1, w2, b2, ctx, prefix, suffix,
                           *, block_b=None):
    B, vis_dim = im_features.shape
    n_ctx, ctx_dim = ctx.shape
    n_cls = prefix.shape[0]
    n_suf = suffix.shape[1]
    seq = 1 + n_ctx + n_suf
    hid = w1.shape[1]

    out_dtype = ctx.dtype
    itemsize = jnp.dtype(out_dtype).itemsize

    # Batch-invariant template: prefix in seq row 0, zeros in the n_ctx ctx rows
    # (overwritten in-kernel), suffix in rows 1+n_ctx..seq-1.
    template = jnp.concatenate(
        [prefix.astype(out_dtype),
         jnp.zeros((n_cls, n_ctx, ctx_dim), out_dtype),
         suffix.astype(out_dtype)],
        axis=1)                                      # (n_cls, seq, ctx_dim)

    # --- block_b selection: several grid steps (pipelining + both v7x TCs) while
    # keeping the double-buffered output block inside every chip's VMEM budget.
    out_block_row_bytes = n_cls * seq * ctx_dim * itemsize          # per batch row
    if block_b is None:
        block_b = 8 if B >= 16 else max(1, B // 2)                  # >= 2 steps when B > 1
    vmem_cap = max(1, (8 << 20) // (2 * out_block_row_bytes))       # ~8 MiB for out double-buffer
    block_b = max(1, min(block_b, vmem_cap, B))
    while B % block_b:                                              # largest divisor of B <= cap
        block_b -= 1
    grid = (pl.cdiv(B, block_b),)

    def _nbytes(a):
        return a.size * a.dtype.itemsize

    cost = pl.CostEstimate(
        flops=2 * B * (vis_dim * hid + hid * ctx_dim),
        transcendentals=0,
        bytes_accessed=(sum(_nbytes(a) for a in
                            (im_features, w1, b1, w2, b2, ctx, template))
                        + B * n_cls * seq * ctx_dim * itemsize),
    )

    return pl.pallas_call(
        prompt_learner_kernel,
        out_shape=jax.ShapeDtypeStruct((B, n_cls, seq, ctx_dim), out_dtype),
        grid=grid,
        in_specs=[
            pl.BlockSpec((B, vis_dim),          lambda i: (0, 0)),      # im_features (resident, tiny)
            pl.BlockSpec((vis_dim, hid),        lambda i: (0, 0)),      # meta_net.linear1.weight
            pl.BlockSpec((1, hid),              lambda i: (0, 0)),      # meta_net.linear1.bias
            pl.BlockSpec((hid, ctx_dim),        lambda i: (0, 0)),      # meta_net.linear2.weight
            pl.BlockSpec((1, ctx_dim),          lambda i: (0, 0)),      # meta_net.linear2.bias
            pl.BlockSpec((n_ctx, ctx_dim),      lambda i: (0, 0)),      # ctx
            pl.BlockSpec((n_cls, seq, ctx_dim), lambda i: (0, 0, 0)),   # prefix+suffix template
        ],
        out_specs=pl.BlockSpec((block_b, n_cls, seq, ctx_dim),
                               lambda i: (i, 0, 0, 0)),
        compiler_params=pltpu.CompilerParams(dimension_semantics=("parallel",)),
        cost_estimate=cost,
    )(im_features, w1, b1, w2, b2, ctx, template)


if __name__ == "__main__":
    # Shapes implied by the module: classnames=['cat','book'] -> n_cls=2, n_ctx=4,
    # ctx_dim = transformer_width = 512, vis_dim = 1024, CLIP context_length = 77.
    B = 2
    n_cls = 2
    n_ctx = 4
    ctx_dim = 512
    vis_dim = 1024
    hid = vis_dim // 16
    seq = 77
    n_suf = seq - 1 - n_ctx

    key = jax.random.PRNGKey(0)
    ks = jax.random.split(key, 8)

    im_features = jax.random.normal(ks[0], (B, vis_dim), jnp.float32)

    # Parameters initialized deterministically in-script (synthetic, not a checkpoint load).
    ctx = 0.02 * jax.random.normal(ks[1], (n_ctx, ctx_dim), jnp.float32)        # nn.init.normal_(std=0.02)
    # token_prefix / token_suffix come from token_embedding (init std=0.02) of the tokenized prompts.
    # TODO(synk): no CLIP tokenizer / embedding table here; use synthetic std=0.02 embeddings instead.
    prefix = 0.02 * jax.random.normal(ks[2], (n_cls, 1, ctx_dim), jnp.float32)
    suffix = 0.02 * jax.random.normal(ks[3], (n_cls, n_suf, ctx_dim), jnp.float32)
    # meta_net parameters, stored input-major (in, out).
    w1 = jax.random.normal(ks[4], (vis_dim, hid), jnp.float32) / jnp.sqrt(vis_dim)
    b1 = 0.01 * jax.random.normal(ks[5], (1, hid), jnp.float32)
    w2 = jax.random.normal(ks[6], (hid, ctx_dim), jnp.float32) / jnp.sqrt(hid)
    b2 = 0.01 * jax.random.normal(ks[7], (1, ctx_dim), jnp.float32)

    prompts = prompt_learner_forward(im_features, w1, b1, w2, b2, ctx, prefix, suffix)
    prompts = jax.block_until_ready(prompts)

    # Pure-JAX reference of the PyTorch forward semantics.
    bias = jnp.maximum(im_features @ w1 + b1, 0.0) @ w2 + b2                    # (B, ctx_dim)
    ctx_shifted = ctx[None, :, :] + bias[:, None, :]                            # (B, n_ctx, ctx_dim)
    ref = jnp.concatenate(
        [jnp.broadcast_to(prefix[None], (B, n_cls, 1, ctx_dim)),
         jnp.broadcast_to(ctx_shifted[:, None], (B, n_cls, n_ctx, ctx_dim)),
         jnp.broadcast_to(suffix[None], (B, n_cls, n_suf, ctx_dim))],
        axis=2)                                                                 # (B, n_cls, 77, ctx_dim)

    assert prompts.shape == (B, n_cls, seq, ctx_dim), prompts.shape
    assert jnp.allclose(prompts, ref, atol=1e-5, rtol=1e-5)
    print("KERNEL_OK")
</pallas_src>

<mosaic_0001>
module attributes {stable_mosaic.version = 11 : i64} {
  func.func @prompt_learner_kernel(%arg0: i32, %arg1: memref<2x1024xf32, #tpu.memory_space<vmem>>, %arg2: memref<1024x64xf32, #tpu.memory_space<vmem>>, %arg3: memref<1x64xf32, #tpu.memory_space<vmem>>, %arg4: memref<64x512xf32, #tpu.memory_space<vmem>>, %arg5: memref<1x512xf32, #tpu.memory_space<vmem>>, %arg6: memref<4x512xf32, #tpu.memory_space<vmem>>, %arg7: memref<2x77x512xf32, #tpu.memory_space<vmem>>, %arg8: memref<1x2x77x512xf32, #tpu.memory_space<vmem>>) attributes {dimension_semantics = [#tpu.dimension_semantics<parallel>], iteration_bounds = array<i64: 2>, scalar_prefetch = 0 : i64, scratch_operands = 0 : i64, tpu.core_type = #tpu.core_type<tc>, window_params = [{pipeline_mode = #tpu.pipeline_mode<synchronous>, transform_indices = @transform_0, window_bounds = array<i64: 2, 1024>}, {pipeline_mode = #tpu.pipeline_mode<synchronous>, transform_indices = @transform_1, window_bounds = array<i64: 1024, 64>}, {pipeline_mode = #tpu.pipeline_mode<synchronous>, transform_indices = @transform_2, window_bounds = array<i64: 1, 64>}, {pipeline_mode = #tpu.pipeline_mode<synchronous>, transform_indices = @transform_3, window_bounds = array<i64: 64, 512>}, {pipeline_mode = #tpu.pipeline_mode<synchronous>, transform_indices = @transform_4, window_bounds = array<i64: 1, 512>}, {pipeline_mode = #tpu.pipeline_mode<synchronous>, transform_indices = @transform_5, window_bounds = array<i64: 4, 512>}, {pipeline_mode = #tpu.pipeline_mode<synchronous>, transform_indices = @transform_6, window_bounds = array<i64: 2, 77, 512>}, {transform_indices = @transform_7, window_bounds = array<i64: 1, 2, 77, 512>}]} {
    %c0 = arith.constant 0 : index
    %c0_0 = arith.constant 0 : index
    %c0_1 = arith.constant 0 : index
    %0 = vector.load %arg7[%c0, %c0_0, %c0_1] : memref<2x77x512xf32, #tpu.memory_space<vmem>>, vector<2x77x512xf32>
    %1 = vector.shape_cast %0 : vector<2x77x512xf32> to vector<1x2x77x512xf32>
    %c0_2 = arith.constant 0 : index
    %c0_3 = arith.constant 0 : index
    %c0_4 = arith.constant 0 : index
    %c0_5 = arith.constant 0 : index
    %2 = vector.load %arg8[%c0_2, %c0_3, %c0_4, %c0_5] : memref<1x2x77x512xf32, #tpu.memory_space<vmem>>, vector<1x2x77x512xf32>
    tpu.vector_store %arg8[%c0_2, %c0_3, %c0_4, %c0_5], %1 {strides = array<i32>} : memref<1x2x77x512xf32, #tpu.memory_space<vmem>>, vector<1x2x77x512xf32>,
    %c1_i32 = arith.constant 1 : i32
    %3 = arith.muli %arg0, %c1_i32 : i32
    %4 = tpu.assume_multiple %3, 1 : i32
    %5 = arith.index_cast %4 : i32 to index
    %c0_6 = arith.constant 0 : index
    %6 = vector.load %arg1[%5, %c0_6] : memref<2x1024xf32, #tpu.memory_space<vmem>>, vector<1x1024xf32>
    %c0_7 = arith.constant 0 : index
    %c0_8 = arith.constant 0 : index
    %7 = vector.load %arg2[%c0_7, %c0_8] : memref<1024x64xf32, #tpu.memory_space<vmem>>, vector<1024x64xf32>
    %cst = arith.constant dense<0.000000e+00> : vector<1x64xf32>
    %8 = tpu.matmul %6, %7, %cst {dimension_numbers = #tpu.dot_dimension_numbers<[1], [0], [0], [1], [0, 0, 1, 1], [], []>} : vector<1x1024xf32>, vector<1024x64xf32>, vector<1x64xf32> -> vector<1x64xf32>
    %c0_9 = arith.constant 0 : index
    %c0_10 = arith.constant 0 : index
    %9 = vector.load %arg3[%c0_9, %c0_10] : memref<1x64xf32, #tpu.memory_space<vmem>>, vector<1x64xf32>
    %10 = arith.addf %8, %9 : vector<1x64xf32>
    %cst_11 = arith.constant 0.000000e+00 : f32
    %11 = vector.broadcast %cst_11 : f32 to vector<1x64xf32>
    %12 = arith.maximumf %10, %11 : vector<1x64xf32>
    %c0_12 = arith.constant 0 : index
    %c0_13 = arith.constant 0 : index
    %13 = vector.load %arg4[%c0_12, %c0_13] : memref<64x512xf32, #tpu.memory_space<vmem>>, vector<64x512xf32>
    %cst_14 = arith.constant dense<0.000000e+00> : vector<1x512xf32>
    %14 = tpu.matmul %12, %13, %cst_14 {dimension_numbers = #tpu.dot_dimension_numbers<[1], [0], [0], [1], [0, 0, 1, 1], [], []>} : vector<1x64xf32>, vector<64x512xf32>, vector<1x512xf32> -> vector<1x512xf32>
    %c0_15 = arith.constant 0 : index
    %c0_16 = arith.constant 0 : index
    %15 = vector.load %arg5[%c0_15, %c0_16] : memref<1x512xf32, #tpu.memory_space<vmem>>, vector<1x512xf32>
    %16 = arith.addf %14, %15 : vector<1x512xf32>
    %c0_17 = arith.constant 0 : index
    %c0_18 = arith.constant 0 : index
    %17 = vector.load %arg6[%c0_17, %c0_18] : memref<4x512xf32, #tpu.memory_space<vmem>>, vector<4x512xf32>
    %18 = vector.shape_cast %17 : vector<4x512xf32> to vector<1x4x512xf32>
    %19 = vector.shape_cast %16 : vector<1x512xf32> to vector<1x1x512xf32>
    %20 = vector.broadcast %19 : vector<1x1x512xf32> to vector<1x4x512xf32>
    %21 = arith.addf %18, %20 : vector<1x4x512xf32>
    %22 = vector.shape_cast %21 : vector<1x4x512xf32> to vector<1x1x4x512xf32>
    %23 = vector.shape_cast %22 : vector<1x1x4x512xf32> to vector<1x1x4x512xf32>
    %24 = vector.broadcast %23 : vector<1x1x4x512xf32> to vector<1x2x4x512xf32>
    %c0_19 = arith.constant 0 : index
    %c0_20 = arith.constant 0 : index
    %c1 = arith.constant 1 : index
    %c0_21 = arith.constant 0 : index
    %25 = vector.load %arg8[%c0_19, %c0_20, %c1, %c0_21] : memref<1x2x77x512xf32, #tpu.memory_space<vmem>>, vector<1x2x4x512xf32>
    tpu.vector_store %arg8[%c0_19, %c0_20, %c1, %c0_21], %24 {strides = array<i32>} : memref<1x2x77x512xf32, #tpu.memory_space<vmem>>, vector<1x2x4x512xf32>,
    return
  }
  func.func @transform_0(%arg0: i32) -> (i32, i32) {
    %c0_i32 = arith.constant 0 : i32
    %c0_i32_0 = arith.constant 0 : i32
    %c0_i32_1 = arith.constant 0 : i32
    return %c0_i32, %c0_i32_0 : i32, i32
  }
  func.func @transform_1(%arg0: i32) -> (i32, i32) {
    %c0_i32 = arith.constant 0 : i32
    %c0_i32_0 = arith.constant 0 : i32
    %c0_i32_1 = arith.constant 0 : i32
    return %c0_i32, %c0_i32_0 : i32, i32
  }
  func.func @transform_2(%arg0: i32) -> (i32, i32) {
    %c0_i32 = arith.constant 0 : i32
    %c0_i32_0 = arith.constant 0 : i32
    %c0_i32_1 = arith.constant 0 : i32
    return %c0_i32, %c0_i32_0 : i32, i32
  }
  func.func @transform_3(%arg0: i32) -> (i32, i32) {
    %c0_i32 = arith.constant 0 : i32
    %c0_i32_0 = arith.constant 0 : i32
    %c0_i32_1 = arith.constant 0 : i32
    return %c0_i32, %c0_i32_0 : i32, i32
  }
  func.func @transform_4(%arg0: i32) -> (i32, i32) {
    %c0_i32 = arith.constant 0 : i32
    %c0_i32_0 = arith.constant 0 : i32
    %c0_i32_1 = arith.constant 0 : i32
    return %c0_i32, %c0_i32_0 : i32, i32
  }
  func.func @transform_5(%arg0: i32) -> (i32, i32) {
    %c0_i32 = arith.constant 0 : i32
    %c0_i32_0 = arith.constant 0 : i32
    %c0_i32_1 = arith.constant 0 : i32
    return %c0_i32, %c0_i32_0 : i32, i32
  }
  func.func @transform_6(%arg0: i32) -> (i32, i32, i32) {
    %c0_i32 = arith.constant 0 : i32
    %c0_i32_0 = arith.constant 0 : i32
    %c0_i32_1 = arith.constant 0 : i32
    %c0_i32_2 = arith.constant 0 : i32
    return %c0_i32, %c0_i32_0, %c0_i32_1 : i32, i32, i32
  }
  func.func @transform_7(%arg0: i32) -> (i32, i32, i32, i32) {
    %c0_i32 = arith.constant 0 : i32
    %c0_i32_0 = arith.constant 0 : i32
    %c0_i32_1 = arith.constant 0 : i32
    %c0_i32_2 = arith.constant 0 : i32
    return %arg0, %c0_i32, %c0_i32_0, %c0_i32_1 : i32, i32, i32, i32
  }
}

</mosaic_0001>

<llo_original>
// kernel: tpu_custom_call.1
$region0: #{tpu_custom_call.1}
  #allocation0 [shape = 'u32[]', space=smem, size = 0x4, offset = 0x4, fixed_abs, tag = 'smem constant byte address 0x4 - core index']
  #allocation1 [shape = 'u32[72,128]{1,0:T(1,128)}', space=vmem, size = 0x9000, scoped, tag = 'internal scratch']
  %s0 = inlined_call_operand.vmem [shape: f32[2,1024], index: 0, kind: input, shape index: {}]
  %s1 = inlined_call_operand.vmem [shape: f32[1024,64], index: 1, kind: input, shape index: {}]
  %s2 = inlined_call_operand.vmem [shape: f32[1,64], index: 2, kind: input, shape index: {}]
  %s3 = inlined_call_operand.vmem [shape: f32[64,512], index: 3, kind: input, shape index: {}]
  %s4 = inlined_call_operand.vmem [shape: f32[1,512], index: 4, kind: input, shape index: {}]
  %s5 = inlined_call_operand.vmem [shape: f32[4,512], index: 5, kind: input, shape index: {}]
  %s6 = inlined_call_operand.vmem [shape: f32[2,77,512], index: 6, kind: input, shape index: {}]
  %s7 = inlined_call_operand.vmem [shape: f32[2,2,77,512], index: 7, kind: output, shape index: {}]
  %s8 = sld [smem:[#allocation0]]
  $region61: #{tpu_custom_call.1} parent=0
    _
  %s10 = ssub.s32 1, %s8
  %s11 = scalar_select 0, %s10, %s8
  loop: start=0, step=1, limit=4
  $region2: #{tpu_custom_call.1} parent=0 // loop_pre_header
    _
  $region3: #{tpu_custom_call.1} parent=0 // loop_header
    %s13 = sphi 0, %s17
    %p14 = scmp.ge.s32.totalorder %s13, 4
    %s21 = sphi 0, %s21
    %s23 = sphi 0, %s21
    %s24 = sphi 0, %s23
    %s38 = sphi 0, %s24
    %s42 = sphi 0, %s42
    %s44 = sphi 0, %s42
    %s45 = sphi 0, %s44
    %s59 = sphi 0, %s45
    %s63 = sphi 0, %s63
    %s65 = sphi 0, %s63
    %s66 = sphi 0, %s65
    %s80 = sphi 0, %s66
    %s84 = sphi 0, %s84
    %s86 = sphi 0, %s84
    %s87 = sphi 0, %s86
    %s101 = sphi 0, %s87
    %s105 = sphi 0, %s105
    %s107 = sphi 0, %s105
    %s108 = sphi 0, %s107
    %s122 = sphi 0, %s108
    %s126 = sphi 0, %s126
    %s128 = sphi 0, %s126
    %s129 = sphi 0, %s128
    %s143 = sphi 0, %s129
    %s147 = sphi 0, %s147
    %s149 = sphi 0, %s147
    %s150 = sphi 0, %s149
    %s164 = sphi 0, %s150
    %s170 = sphi 0, %s172
    %s173 = sphi 0, %s170
    %s174 = sphi 0, %s173
    %s190 = sphi 0, %s174
  $region4: #{tpu_custom_call.1} parent=0 // loop_header_branch
    %16 = sbr.rel (%p14) target = $region8
  $region5: #{tpu_custom_call.1} parent=0 // loop_body
    %s18 = ssub.s32 %s13, 1
    %s19 = ssub.s32 %s13, 2
    %s20 = sadd.s32 %s13, 1
    %s22 = sadd.s32 %s21, 1
    %p25 = scmp.eq.s32.totalorder %s13, 1
    %p26 = scmp.ne.s32.totalorder %s21, %s23
    %p27 = scmp.eq.s32.totalorder %s13, 0
    %p28 = por %p26, %p27
    %p29 = scmp.ne.s32.totalorder %s21, %s23
    %p30 = scmp.eq.s32.totalorder %s18, 1
    %p31 = por %p29, %p30
    %p32 = scmp.ne.s32.totalorder %s23, %s24
    %p33 = scmp.eq.s32.totalorder %s18, 0
    %p34 = por %p32, %p33
    %p35 = scmp.ne.s32.totalorder %s23, %s24
    %p36 = scmp.eq.s32.totalorder %s19, 1
    %p37 = por %p35, %p36
    %p39 = scmp.ne.s32.totalorder %s24, %s38
    %p40 = scmp.eq.s32.totalorder %s19, 0
    %p41 = por %p39, %p40
    %s43 = sadd.s32 %s42, 1
    %p46 = scmp.eq.s32.totalorder %s13, 1
    %p47 = scmp.ne.s32.totalorder %s42, %s44
    %p48 = scmp.eq.s32.totalorder %s13, 0
    %p49 = por %p47, %p48
    %p50 = scmp.ne.s32.totalorder %s42, %s44
    %p51 = scmp.eq.s32.totalorder %s18, 1
    %p52 = por %p50, %p51
    %p53 = scmp.ne.s32.totalorder %s44, %s45
    %p54 = scmp.eq.s32.totalorder %s18, 0
    %p55 = por %p53, %p54
    %p56 = scmp.ne.s32.totalorder %s44, %s45
    %p57 = scmp.eq.s32.totalorder %s19, 1
    %p58 = por %p56, %p57
    %p60 = scmp.ne.s32.totalorder %s45, %s59
    %p61 = scmp.eq.s32.totalorder %s19, 0
    %p62 = por %p60, %p61
    %s64 = sadd.s32 %s63, 1
    %p67 = scmp.eq.s32.totalorder %s13, 1
    %p68 = scmp.ne.s32.totalorder %s63, %s65
    %p69 = scmp.eq.s32.totalorder %s13, 0
    %p70 = por %p68, %p69
    %p71 = scmp.ne.s32.totalorder %s63, %s65
    %p72 = scmp.eq.s32.totalorder %s18, 1
    %p73 = por %p71, %p72
    %p74 = scmp.ne.s32.totalorder %s65, %s66
    %p75 = scmp.eq.s32.totalorder %s18, 0
    %p76 = por %p74, %p75
    %p77 = scmp.ne.s32.totalorder %s65, %s66
    %p78 = scmp.eq.s32.totalorder %s19, 1
    %p79 = por %p77, %p78
    %p81 = scmp.ne.s32.totalorder %s66, %s80
    %p82 = scmp.eq.s32.totalorder %s19, 0
    %p83 = por %p81, %p82
    %s85 = sadd.s32 %s84, 1
    %p88 = scmp.eq.s32.totalorder %s13, 1
    %p89 = scmp.ne.s32.totalorder %s84, %s86
    %p90 = scmp.eq.s32.totalorder %s13, 0
    %p91 = por %p89, %p90
    %p92 = scmp.ne.s32.totalorder %s84, %s86
    %p93 = scmp.eq.s32.totalorder %s18, 1
    %p94 = por %p92, %p93
    %p95 = scmp.ne.s32.totalorder %s86, %s87
    %p96 = scmp.eq.s32.totalorder %s18, 0
    %p97 = por %p95, %p96
    %p98 = scmp.ne.s32.totalorder %s86, %s87
    %p99 = scmp.eq.s32.totalorder %s19, 1
    %p100 = por %p98, %p99
    %p102 = scmp.ne.s32.totalorder %s87, %s101
    %p103 = scmp.eq.s32.totalorder %s19, 0
    %p104 = por %p102, %p103
    %s106 = sadd.s32 %s105, 1
    %p109 = scmp.eq.s32.totalorder %s13, 1
    %p110 = scmp.ne.s32.totalorder %s105, %s107
    %p111 = scmp.eq.s32.totalorder %s13, 0
    %p112 = por %p110, %p111
    %p113 = scmp.ne.s32.totalorder %s105, %s107
    %p114 = scmp.eq.s32.totalorder %s18, 1
    %p115 = por %p113, %p114
    %p116 = scmp.ne.s32.totalorder %s107, %s108
    %p117 = scmp.eq.s32.totalorder %s18, 0
    %p118 = por %p116, %p117
    %p119 = scmp.ne.s32.totalorder %s107, %s108
    %p120 = scmp.eq.s32.totalorder %s19, 1
    %p121 = por %p119, %p120
    %p123 = scmp.ne.s32.totalorder %s108, %s122
    %p124 = scmp.eq.s32.totalorder %s19, 0
    %p125 = por %p123, %p124
    %s127 = sadd.s32 %s126, 1
    %p130 = scmp.eq.s32.totalorder %s13, 1
    %p131 = scmp.ne.s32.totalorder %s126, %s128
    %p132 = scmp.eq.s32.totalorder %s13, 0
    %p133 = por %p131, %p132
    %p134 = scmp.ne.s32.totalorder %s126, %s128
    %p135 = scmp.eq.s32.totalorder %s18, 1
    %p136 = por %p134, %p135
    %p137 = scmp.ne.s32.totalorder %s128, %s129
    %p138 = scmp.eq.s32.totalorder %s18, 0
    %p139 = por %p137, %p138
    %p140 = scmp.ne.s32.totalorder %s128, %s129
    %p141 = scmp.eq.s32.totalorder %s19, 1
    %p142 = por %p140, %p141
    %p144 = scmp.ne.s32.totalorder %s129, %s143
    %p145 = scmp.eq.s32.totalorder %s19, 0
    %p146 = por %p144, %p145
    %s148 = sadd.s32 %s147, 1
    %p151 = scmp.eq.s32.totalorder %s13, 1
    %p152 = scmp.ne.s32.totalorder %s147, %s149
    %p153 = scmp.eq.s32.totalorder %s13, 0
    %p154 = por %p152, %p153
    %p155 = scmp.ne.s32.totalorder %s147, %s149
    %p156 = scmp.eq.s32.totalorder %s18, 1
    %p157 = por %p155, %p156
    %p158 = scmp.ne.s32.totalorder %s149, %s150
    %p159 = scmp.eq.s32.totalorder %s18, 0
    %p160 = por %p158, %p159
    %p161 = scmp.ne.s32.totalorder %s149, %s150
    %p162 = scmp.eq.s32.totalorder %s19, 1
    %p163 = por %p161, %p162
    %p165 = scmp.ne.s32.totalorder %s150, %s164
    %p166 = scmp.eq.s32.totalorder %s19, 0
    %p167 = por %p165, %p166
    %s168 = ssub.s32 %s13, %s20
    %p169 = scmp.eq.s32.totalorder %s168, 0
    %s171 = sadd.s32 %s170, 1
    %s172 = scalar_select %p169, %s170, %s171
    %p175 = pneg %p169
    %p176 = scmp.eq.s32.totalorder %s13, 1
    %p177 = por %p175, %p176
    %p178 = scmp.ne.s32.totalorder %s170, %s173
    %p179 = scmp.eq.s32.totalorder %s13, 0
    %p180 = por %p178, %p179
    %p181 = scmp.ne.s32.totalorder %s170, %s173
    %p182 = scmp.eq.s32.totalorder %s18, 1
    %p183 = por %p181, %p182
    %p184 = scmp.ne.s32.totalorder %s173, %s174
    %p185 = scmp.eq.s32.totalorder %s18, 0
    %p186 = por %p184, %p185
    %p187 = scmp.ne.s32.totalorder %s173, %s174
    %p188 = scmp.eq.s32.totalorder %s19, 1
    %p189 = por %p187, %p188
    %p191 = scmp.ne.s32.totalorder %s174, %s190
    %p192 = scmp.eq.s32.totalorder %s19, 0
    %p193 = por %p191, %p192
    %p194 = scmp.le.s32.totalorder 1, %s13
    %p195 = scmp.lt.s32.totalorder %s13, 3
    %p196 = pnand %p194, %p195
    %p197 = pneg %p196
    // Predicated region
    $region9: #{tpu_custom_call.1} parent=5 // pred_check
      _
    $region10: #{tpu_custom_call.1} parent=5 // pred_check_branch
      %199 = sbr.rel (%p196) target = $region12
    $region11: #{tpu_custom_call.1} parent=5 // pred_region
      %s200 = ssub.s32 %s13, 1
      // Predicated region
      $region13: #{tpu_custom_call.1} parent=11 // pred_check
        %p201 = pneg %p34
      $region14: #{tpu_custom_call.1} parent=11 // pred_check_branch
        %203 = sbr.rel (%p201) target = $region16
      $region15: #{tpu_custom_call.1} parent=11 // pred_region
        _
      $region16: #{tpu_custom_call.1} parent=11 // pred_fallthru
        _
      // Predicated region
      $region17: #{tpu_custom_call.1} parent=11 // pred_check
        %p204 = pneg %p55
      $region18: #{tpu_custom_call.1} parent=11 // pred_check_branch
        %206 = sbr.rel (%p204) target = $region20
      $region19: #{tpu_custom_call.1} parent=11 // pred_region
        _
      $region20: #{tpu_custom_call.1} parent=11 // pred_fallthru
        _
      // Predicated region
      $region21: #{tpu_custom_call.1} parent=11 // pred_check
        %p207 = pneg %p76
      $region22: #{tpu_custom_call.1} parent=11 // pred_check_branch
        %209 = sbr.rel (%p207) target = $region24
      $region23: #{tpu_custom_call.1} parent=11 // pred_region
        _
      $region24: #{tpu_custom_call.1} parent=11 // pred_fallthru
        _
      // Predicated region
      $region25: #{tpu_custom_call.1} parent=11 // pred_check
        %p210 = pneg %p97
      $region26: #{tpu_custom_call.1} parent=11 // pred_check_branch
        %212 = sbr.rel (%p210) target = $region28
      $region27: #{tpu_custom_call.1} parent=11 // pred_region
        _
      $region28: #{tpu_custom_call.1} parent=11 // pred_fallthru
        _
      // Predicated region
      $region29: #{tpu_custom_call.1} parent=11 // pred_check
        %p213 = pneg %p118
      $region30: #{tpu_custom_call.1} parent=11 // pred_check_branch
        %215 = sbr.rel (%p213) target = $region32
      $region31: #{tpu_custom_call.1} parent=11 // pred_region
        _
      $region32: #{tpu_custom_call.1} parent=11 // pred_fallthru
        _
      // Predicated region
      $region33: #{tpu_custom_call.1} parent=11 // pred_check
        %p216 = pneg %p139
      $region34: #{tpu_custom_call.1} parent=11 // pred_check_branch
        %218 = sbr.rel (%p216) target = $region36
      $region35: #{tpu_custom_call.1} parent=11 // pred_region
        _
      $region36: #{tpu_custom_call.1} parent=11 // pred_fallthru
        _
      // Predicated region
      $region37: #{tpu_custom_call.1} parent=11 // pred_check
        %p219 = pneg %p160
      $region38: #{tpu_custom_call.1} parent=11 // pred_check_branch
        %221 = sbr.rel (%p219) target = $region40
      $region39: #{tpu_custom_call.1} parent=11 // pred_region
        _
      $region40: #{tpu_custom_call.1} parent=11 // pred_fallthru
        _
    $region12: #{tpu_custom_call.1} parent=5 // pred_fallthru
      _
    %p222 = scmp.lt.s32.totalorder %s13, 2
    // Predicated region
    $region41: #{tpu_custom_call.1} parent=5 // pred_check
      %p223 = pneg %p222
    $region42: #{tpu_custom_call.1} parent=5 // pred_check_branch
      %225 = sbr.rel (%p223) target = $region44
    $region43: #{tpu_custom_call.1} parent=5 // pred_region
      _
    $region44: #{tpu_custom_call.1} parent=5 // pred_fallthru
      _
    %p226 = scmp.le.s32.totalorder 1, %s13
    %p227 = scmp.lt.s32.totalorder %s13, 3
    %p228 = pnand %p226, %p227
    %p229 = pneg %p228
    // Predicated region
    $region45: #{tpu_custom_call.1} parent=5 // pred_check
      _
    $region46: #{tpu_custom_call.1} parent=5 // pred_check_branch
      %231 = sbr.rel (%p228) target = $region48
    $region47: #{tpu_custom_call.1} parent=5 // pred_region
      %s232 = ssub.s32 %s13, 1
      %p233 = pneg %p34
      %p234 = pneg %p31
      %p235 = pneg %p55
      %p236 = pneg %p52
      %p237 = pneg %p76
      %p238 = pneg %p73
      %p239 = pneg %p97
      %p240 = pneg %p94
      %p241 = pneg %p118
      %p242 = pneg %p115
      %p243 = pneg %p139
      %p244 = pneg %p136
      %p245 = pneg %p160
      %p246 = pneg %p157
      %p247 = pneg %p186
      %p248 = pneg %p183
      %p249 = scmp.lt.s32.totalorder %s18, 1
      %s250 = scalar_select %p249, %s18, 1
      %s251 = smul.addr %s250, 80
      %s252 = smul.addr %s251, 8
      %s253 = scalar_lea.vmem %s7, %s252
      %p254 = scmp.lt.s32.totalorder %s18, 1
      %s255 = scalar_select %p254, %s18, 1
      %s256 = smul.addr %s255, 80
      %s257 = smul.addr %s256, 8
      %s258 = scalar_lea.vmem %s7, %s257
      %v259 = vld [vmem:[%s6] sm:$0xff]
      %v260 = vld [vmem:[%s6 + $0x8] sm:$0xff]
      %v261 = vld [vmem:[%s6 + $0x10] sm:$0xff]
      %v262 = vld [vmem:[%s6 + $0x18] sm:$0xff]
      %v263 = vld [vmem:[%s6 + $0x20] sm:$0xff]
      %v264 = vld [vmem:[%s6 + $0x28] sm:$0xff]
      %v265 = vld [vmem:[%s6 + $0x30] sm:$0xff]
      %v266 = vld [vmem:[%s6 + $0x38] sm:$0xff]
      %v267 = vld [vmem:[%s6 + $0x40] sm:$0xff]
      %v268 = vld [vmem:[%s6 + $0x48] sm:$0xff]
      %v269 = vld [vmem:[%s6 + $0x50] sm:$0xff]
      %v270 = vld [vmem:[%s6 + $0x58] sm:$0xff]
      %v271 = vld [vmem:[%s6 + $0x60] sm:$0xff]
      %v272 = vld [vmem:[%s6 + $0x68] sm:$0xff]
      %v273 = vld [vmem:[%s6 + $0x70] sm:$0xff]
      %v274 = vld [vmem:[%s6 + $0x78] sm:$0xff]
      %v275 = vld [vmem:[%s6 + $0x80] sm:$0xff]
      %v276 = vld [vmem:[%s6 + $0x88] sm:$0xff]
      %v277 = vld [vmem:[%s6 + $0x90] sm:$0xff]
      %v278 = vld [vmem:[%s6 + $0x98] sm:$0xff]
      %v279 = vld [vmem:[%s6 + $0xa0] sm:$0xff]
      %v280 = vld [vmem:[%s6 + $0xa8] sm:$0xff]
      %v281 = vld [vmem:[%s6 + $0xb0] sm:$0xff]
      %v282 = vld [vmem:[%s6 + $0xb8] sm:$0xff]
      %v283 = vld [vmem:[%s6 + $0xc0] sm:$0xff]
      %v284 = vld [vmem:[%s6 + $0xc8] sm:$0xff]
      %v285 = vld [vmem:[%s6 + $0xd0] sm:$0xff]
      %v286 = vld [vmem:[%s6 + $0xd8] sm:$0xff]
      %v287 = vld [vmem:[%s6 + $0xe0] sm:$0xff]
      %v288 = vld [vmem:[%s6 + $0xe8] sm:$0xff]
      %v289 = vld [vmem:[%s6 + $0xf0] sm:$0xff]
      %v290 = vld [vmem:[%s6 + $0xf8] sm:$0xff]
      %v291 = vld [vmem:[%s6 + $0x100] sm:$0xff]
      %v292 = vld [vmem:[%s6 + $0x108] sm:$0xff]
      %v293 = vld [vmem:[%s6 + $0x110] sm:$0xff]
      %v294 = vld [vmem:[%s6 + $0x118] sm:$0xff]
      %v295 = vld [vmem:[%s6 + $0x120] sm:$0x1f]
      %v296 = vld [vmem:[%s6 + $0x128] sm:$0x1f]
      %v297 = vld [vmem:[%s6 + $0x130] sm:$0x1f]
      %v298 = vld [vmem:[%s6 + $0x138] sm:$0x1f]
      %v299 = vld [vmem:[%s6 + $0x140] sm:$0xff]
      %v300 = vld [vmem:[%s6 + $0x148] sm:$0xff]
      %v301 = vld [vmem:[%s6 + $0x150] sm:$0xff]
      %v302 = vld [vmem:[%s6 + $0x158] sm:$0xff]
      %v303 = vld [vmem:[%s6 + $0x160] sm:$0xff]
      %v304 = vld [vmem:[%s6 + $0x168] sm:$0xff]
      %v305 = vld [vmem:[%s6 + $0x170] sm:$0xff]
      %v306 = vld [vmem:[%s6 + $0x178] sm:$0xff]
      %v307 = vld [vmem:[%s6 + $0x180] sm:$0xff]
      %v308 = vld [vmem:[%s6 + $0x188] sm:$0xff]
      %v309 = vld [vmem:[%s6 + $0x190] sm:$0xff]
      %v310 = vld [vmem:[%s6 + $0x198] sm:$0xff]
      %v311 = vld [vmem:[%s6 + $0x1a0] sm:$0xff]
      %v312 = vld [vmem:[%s6 + $0x1a8] sm:$0xff]
      %v313 = vld [vmem:[%s6 + $0x1b0] sm:$0xff]
      %v314 = vld [vmem:[%s6 + $0x1b8] sm:$0xff]
      %v315 = vld [vmem:[%s6 + $0x1c0] sm:$0xff]
      %v316 = vld [vmem:[%s6 + $0x1c8] sm:$0xff]
      %v317 = vld [vmem:[%s6 + $0x1d0] sm:$0xff]
      %v318 = vld [vmem:[%s6 + $0x1d8] sm:$0xff]
      %v319 = vld [vmem:[%s6 + $0x1e0] sm:$0xff]
      %v320 = vld [vmem:[%s6 + $0x1e8] sm:$0xff]
      %v321 = vld [vmem:[%s6 + $0x1f0] sm:$0xff]
      %v322 = vld [vmem:[%s6 + $0x1f8] sm:$0xff]
      %v323 = vld [vmem:[%s6 + $0x200] sm:$0xff]
      %v324 = vld [vmem:[%s6 + $0x208] sm:$0xff]
      %v325 = vld [vmem:[%s6 + $0x210] sm:$0xff]
      %v326 = vld [vmem:[%s6 + $0x218] sm:$0xff]
      %v327 = vld [vmem:[%s6 + $0x220] sm:$0xff]
      %v328 = vld [vmem:[%s6 + $0x228] sm:$0xff]
      %v329 = vld [vmem:[%s6 + $0x230] sm:$0xff]
      %v330 = vld [vmem:[%s6 + $0x238] sm:$0xff]
      %v331 = vld [vmem:[%s6 + $0x240] sm:$0xff]
      %v332 = vld [vmem:[%s6 + $0x248] sm:$0xff]
      %v333 = vld [vmem:[%s6 + $0x250] sm:$0xff]
      %v334 = vld [vmem:[%s6 + $0x258] sm:$0xff]
      %v335 = vld [vmem:[%s6 + $0x260] sm:$0x1f]
      %v336 = vld [vmem:[%s6 + $0x268] sm:$0x1f]
      %v337 = vld [vmem:[%s6 + $0x270] sm:$0x1f]
      %v338 = vld [vmem:[%s6 + $0x278] sm:$0x1f]
      %339 = vst [vmem:[%s258] sm:$0xff] %v259
      %340 = vst [vmem:[%s258 + $0x8] sm:$0xff] %v260
      %341 = vst [vmem:[%s258 + $0x10] sm:$0xff] %v261
      %342 = vst [vmem:[%s258 + $0x18] sm:$0xff] %v262
      %343 = vst [vmem:[%s258 + $0x20] sm:$0xff] %v263
      %344 = vst [vmem:[%s258 + $0x28] sm:$0xff] %v264
      %345 = vst [vmem:[%s258 + $0x30] sm:$0xff] %v265
      %346 = vst [vmem:[%s258 + $0x38] sm:$0xff] %v266
      %347 = vst [vmem:[%s258 + $0x40] sm:$0xff] %v267
      %348 = vst [vmem:[%s258 + $0x48] sm:$0xff] %v268
      %349 = vst [vmem:[%s258 + $0x50] sm:$0xff] %v269
      %350 = vst [vmem:[%s258 + $0x58] sm:$0xff] %v270
      %351 = vst [vmem:[%s258 + $0x60] sm:$0xff] %v271
      %352 = vst [vmem:[%s258 + $0x68] sm:$0xff] %v272
      %353 = vst [vmem:[%s258 + $0x70] sm:$0xff] %v273
      %354 = vst [vmem:[%s258 + $0x78] sm:$0xff] %v274
      %355 = vst [vmem:[%s258 + $0x80] sm:$0xff] %v275
      %356 = vst [vmem:[%s258 + $0x88] sm:$0xff] %v276
      %357 = vst [vmem:[%s258 + $0x90] sm:$0xff] %v277
      %358 = vst [vmem:[%s258 + $0x98] sm:$0xff] %v278
      %359 = vst [vmem:[%s258 + $0xa0] sm:$0xff] %v279
      %360 = vst [vmem:[%s258 + $0xa8] sm:$0xff] %v280
      %361 = vst [vmem:[%s258 + $0xb0] sm:$0xff] %v281
      %362 = vst [vmem:[%s258 + $0xb8] sm:$0xff] %v282
      %363 = vst [vmem:[%s258 + $0xc0] sm:$0xff] %v283
      %364 = vst [vmem:[%s258 + $0xc8] sm:$0xff] %v284
      %365 = vst [vmem:[%s258 + $0xd0] sm:$0xff] %v285
      %366 = vst [vmem:[%s258 + $0xd8] sm:$0xff] %v286
      %367 = vst [vmem:[%s258 + $0xe0] sm:$0xff] %v287
      %368 = vst [vmem:[%s258 + $0xe8] sm:$0xff] %v288
      %369 = vst [vmem:[%s258 + $0xf0] sm:$0xff] %v289
      %370 = vst [vmem:[%s258 + $0xf8] sm:$0xff] %v290
      %371 = vst [vmem:[%s258 + $0x100] sm:$0xff] %v291
      %372 = vst [vmem:[%s258 + $0x108] sm:$0xff] %v292
      %373 = vst [vmem:[%s258 + $0x110] sm:$0xff] %v293
      %374 = vst [vmem:[%s258 + $0x118] sm:$0xff] %v294
      %375 = vst [vmem:[%s258 + $0x120] sm:$0x1f] %v295
      %376 = vst [vmem:[%s258 + $0x128] sm:$0x1f] %v296
      %377 = vst [vmem:[%s258 + $0x130] sm:$0x1f] %v297
      %378 = vst [vmem:[%s258 + $0x138] sm:$0x1f] %v298
      %379 = vst [vmem:[%s258 + $0x140] sm:$0xff] %v299
      %380 = vst [vmem:[%s258 + $0x148] sm:$0xff] %v300
      %381 = vst [vmem:[%s258 + $0x150] sm:$0xff] %v301
      %382 = vst [vmem:[%s258 + $0x158] sm:$0xff] %v302
      %383 = vst [vmem:[%s258 + $0x160] sm:$0xff] %v303
      %384 = vst [vmem:[%s258 + $0x168] sm:$0xff] %v304
      %385 = vst [vmem:[%s258 + $0x170] sm:$0xff] %v305
      %386 = vst [vmem:[%s258 + $0x178] sm:$0xff] %v306
      %387 = vst [vmem:[%s258 + $0x180] sm:$0xff] %v307
      %388 = vst [vmem:[%s258 + $0x188] sm:$0xff] %v308
      %389 = vst [vmem:[%s258 + $0x190] sm:$0xff] %v309
      %390 = vst [vmem:[%s258 + $0x198] sm:$0xff] %v310
      %391 = vst [vmem:[%s258 + $0x1a0] sm:$0xff] %v311
      %392 = vst [vmem:[%s258 + $0x1a8] sm:$0xff] %v312
      %393 = vst [vmem:[%s258 + $0x1b0] sm:$0xff] %v313
      %394 = vst [vmem:[%s258 + $0x1b8] sm:$0xff] %v314
      %395 = vst [vmem:[%s258 + $0x1c0] sm:$0xff] %v315
      %396 = vst [vmem:[%s258 + $0x1c8] sm:$0xff] %v316
      %397 = vst [vmem:[%s258 + $0x1d0] sm:$0xff] %v317
      %398 = vst [vmem:[%s258 + $0x1d8] sm:$0xff] %v318
      %399 = vst [vmem:[%s258 + $0x1e0] sm:$0xff] %v319
      %400 = vst [vmem:[%s258 + $0x1e8] sm:$0xff] %v320
      %401 = vst [vmem:[%s258 + $0x1f0] sm:$0xff] %v321
      %402 = vst [vmem:[%s258 + $0x1f8] sm:$0xff] %v322
      %403 = vst [vmem:[%s258 + $0x200] sm:$0xff] %v323
      %404 = vst [vmem:[%s258 + $0x208] sm:$0xff] %v324
      %405 = vst [vmem:[%s258 + $0x210] sm:$0xff] %v325
      %406 = vst [vmem:[%s258 + $0x218] sm:$0xff] %v326
      %407 = vst [vmem:[%s258 + $0x220] sm:$0xff] %v327
      %408 = vst [vmem:[%s258 + $0x228] sm:$0xff] %v328
      %409 = vst [vmem:[%s258 + $0x230] sm:$0xff] %v329
      %410 = vst [vmem:[%s258 + $0x238] sm:$0xff] %v330
      %411 = vst [vmem:[%s258 + $0x240] sm:$0xff] %v331
      %412 = vst [vmem:[%s258 + $0x248] sm:$0xff] %v332
      %413 = vst [vmem:[%s258 + $0x250] sm:$0xff] %v333
      %414 = vst [vmem:[%s258 + $0x258] sm:$0xff] %v334
      %415 = vst [vmem:[%s258 + $0x260] sm:$0x1f] %v335
      %416 = vst [vmem:[%s258 + $0x268] sm:$0x1f] %v336
      %417 = vst [vmem:[%s258 + $0x270] sm:$0x1f] %v337
      %418 = vst [vmem:[%s258 + $0x278] sm:$0x1f] %v338
      %s419 = sshra.s32 %s18, 1
      %s420 = sand.u32 %s18, 1
      %s421 = sshra.s32 %s18, 1
      %s422 = sand.u32 %s18, 1
      %s423 = smul.u32 %s419, 8
      %s424 = smul.u32 %s423, 2
      %s425 = sadd.s32 %s424, %s422
      %s426 = scalar_lea.vmem %s0, %s425
      %v427 = vld [vmem:[%s426] ss:$2 sm:$0xff]
      %v428 = vld [vmem:[%s1] sm:$0xff]
      %v429 = vld [vmem:[%s1 + $0x8] sm:$0xff]
      %v430 = vld [vmem:[%s1 + $0x10] sm:$0xff]
      %v431 = vld [vmem:[%s1 + $0x18] sm:$0xff]
      %v432 = vld [vmem:[%s1 + $0x20] sm:$0xff]
      %v433 = vld [vmem:[%s1 + $0x28] sm:$0xff]
      %v434 = vld [vmem:[%s1 + $0x30] sm:$0xff]
      %v435 = vld [vmem:[%s1 + $0x38] sm:$0xff]
      %v436 = vld [vmem:[%s1 + $0x40] sm:$0xff]
      %v437 = vld [vmem:[%s1 + $0x48] sm:$0xff]
      %v438 = vld [vmem:[%s1 + $0x50] sm:$0xff]
      %v439 = vld [vmem:[%s1 + $0x58] sm:$0xff]
      %v440 = vld [vmem:[%s1 + $0x60] sm:$0xff]
      %v441 = vld [vmem:[%s1 + $0x68] sm:$0xff]
      %v442 = vld [vmem:[%s1 + $0x70] sm:$0xff]
      %v443 = vld [vmem:[%s1 + $0x78] sm:$0xff]
      %v444 = vld [vmem:[%s1 + $0x80] sm:$0xff]
      %v445 = vld [vmem:[%s1 + $0x88] sm:$0xff]
      %v446 = vld [vmem:[%s1 + $0x90] sm:$0xff]
      %v447 = vld [vmem:[%s1 + $0x98] sm:$0xff]
      %v448 = vld [vmem:[%s1 + $0xa0] sm:$0xff]
      %v449 = vld [vmem:[%s1 + $0xa8] sm:$0xff]
      %v450 = vld [vmem:[%s1 + $0xb0] sm:$0xff]
      %v451 = vld [vmem:[%s1 + $0xb8] sm:$0xff]
      %v452 = vld [vmem:[%s1 + $0xc0] sm:$0xff]
      %v453 = vld [vmem:[%s1 + $0xc8] sm:$0xff]
      %v454 = vld [vmem:[%s1 + $0xd0] sm:$0xff]
      %v455 = vld [vmem:[%s1 + $0xd8] sm:$0xff]
      %v456 = vld [vmem:[%s1 + $0xe0] sm:$0xff]
      %v457 = vld [vmem:[%s1 + $0xe8] sm:$0xff]
      %v458 = vld [vmem:[%s1 + $0xf0] sm:$0xff]
      %v459 = vld [vmem:[%s1 + $0xf8] sm:$0xff]
      %v460 = vld [vmem:[%s1 + $0x100] sm:$0xff]
      %v461 = vld [vmem:[%s1 + $0x108] sm:$0xff]
      %v462 = vld [vmem:[%s1 + $0x110] sm:$0xff]
      %v463 = vld [vmem:[%s1 + $0x118] sm:$0xff]
      %v464 = vld [vmem:[%s1 + $0x120] sm:$0xff]
      %v465 = vld [vmem:[%s1 + $0x128] sm:$0xff]
      %v466 = vld [vmem:[%s1 + $0x130] sm:$0xff]
      %v467 = vld [vmem:[%s1 + $0x138] sm:$0xff]
      %v468 = vld [vmem:[%s1 + $0x140] sm:$0xff]
      %v469 = vld [vmem:[%s1 + $0x148] sm:$0xff]
      %v470 = vld [vmem:[%s1 + $0x150] sm:$0xff]
      %v471 = vld [vmem:[%s1 + $0x158] sm:$0xff]
      %v472 = vld [vmem:[%s1 + $0x160] sm:$0xff]
      %v473 = vld [vmem:[%s1 + $0x168] sm:$0xff]
      %v474 = vld [vmem:[%s1 + $0x170] sm:$0xff]
      %v475 = vld [vmem:[%s1 + $0x178] sm:$0xff]
      %v476 = vld [vmem:[%s1 + $0x180] sm:$0xff]
      %v477 = vld [vmem:[%s1 + $0x188] sm:$0xff]
      %v478 = vld [vmem:[%s1 + $0x190] sm:$0xff]
      %v479 = vld [vmem:[%s1 + $0x198] sm:$0xff]
      %v480 = vld [vmem:[%s1 + $0x1a0] sm:$0xff]
      %v481 = vld [vmem:[%s1 + $0x1a8] sm:$0xff]
      %v482 = vld [vmem:[%s1 + $0x1b0] sm:$0xff]
      %v483 = vld [vmem:[%s1 + $0x1b8] sm:$0xff]
      %v484 = vld [vmem:[%s1 + $0x1c0] sm:$0xff]
      %v485 = vld [vmem:[%s1 + $0x1c8] sm:$0xff]
      %v486 = vld [vmem:[%s1 + $0x1d0] sm:$0xff]
      %v487 = vld [vmem:[%s1 + $0x1d8] sm:$0xff]
      %v488 = vld [vmem:[%s1 + $0x1e0] sm:$0xff]
      %v489 = vld [vmem:[%s1 + $0x1e8] sm:$0xff]
      %v490 = vld [vmem:[%s1 + $0x1f0] sm:$0xff]
      %v491 = vld [vmem:[%s1 + $0x1f8] sm:$0xff]
      %v492 = vld [vmem:[%s1 + $0x200] sm:$0xff]
      %v493 = vld [vmem:[%s1 + $0x208] sm:$0xff]
      %v494 = vld [vmem:[%s1 + $0x210] sm:$0xff]
      %v495 = vld [vmem:[%s1 + $0x218] sm:$0xff]
      %v496 = vld [vmem:[%s1 + $0x220] sm:$0xff]
      %v497 = vld [vmem:[%s1 + $0x228] sm:$0xff]
      %v498 = vld [vmem:[%s1 + $0x230] sm:$0xff]
      %v499 = vld [vmem:[%s1 + $0x238] sm:$0xff]
      %v500 = vld [vmem:[%s1 + $0x240] sm:$0xff]
      %v501 = vld [vmem:[%s1 + $0x248] sm:$0xff]
      %v502 = vld [vmem:[%s1 + $0x250] sm:$0xff]
      %v503 = vld [vmem:[%s1 + $0x258] sm:$0xff]
      %v504 = vld [vmem:[%s1 + $0x260] sm:$0xff]
      %v505 = vld [vmem:[%s1 + $0x268] sm:$0xff]
      %v506 = vld [vmem:[%s1 + $0x270] sm:$0xff]
      %v507 = vld [vmem:[%s1 + $0x278] sm:$0xff]
      %v508 = vld [vmem:[%s1 + $0x280] sm:$0xff]
      %v509 = vld [vmem:[%s1 + $0x288] sm:$0xff]
      %v510 = vld [vmem:[%s1 + $0x290] sm:$0xff]
      %v511 = vld [vmem:[%s1 + $0x298] sm:$0xff]
      %v512 = vld [vmem:[%s1 + $0x2a0] sm:$0xff]
      %v513 = vld [vmem:[%s1 + $0x2a8] sm:$0xff]
      %v514 = vld [vmem:[%s1 + $0x2b0] sm:$0xff]
      %v515 = vld [vmem:[%s1 + $0x2b8] sm:$0xff]
      %v516 = vld [vmem:[%s1 + $0x2c0] sm:$0xff]
      %v517 = vld [vmem:[%s1 + $0x2c8] sm:$0xff]
      %v518 = vld [vmem:[%s1 + $0x2d0] sm:$0xff]
      %v519 = vld [vmem:[%s1 + $0x2d8] sm:$0xff]
      %v520 = vld [vmem:[%s1 + $0x2e0] sm:$0xff]
      %v521 = vld [vmem:[%s1 + $0x2e8] sm:$0xff]
      %v522 = vld [vmem:[%s1 + $0x2f0] sm:$0xff]
      %v523 = vld [vmem:[%s1 + $0x2f8] sm:$0xff]
      %v524 = vld [vmem:[%s1 + $0x300] sm:$0xff]
      %v525 = vld [vmem:[%s1 + $0x308] sm:$0xff]
      %v526 = vld [vmem:[%s1 + $0x310] sm:$0xff]
      %v527 = vld [vmem:[%s1 + $0x318] sm:$0xff]
      %v528 = vld [vmem:[%s1 + $0x320] sm:$0xff]
      %v529 = vld [vmem:[%s1 + $0x328] sm:$0xff]
      %v530 = vld [vmem:[%s1 + $0x330] sm:$0xff]
      %v531 = vld [vmem:[%s1 + $0x338] sm:$0xff]
      %v532 = vld [vmem:[%s1 + $0x340] sm:$0xff]
      %v533 = vld [vmem:[%s1 + $0x348] sm:$0xff]
      %v534 = vld [vmem:[%s1 + $0x350] sm:$0xff]
      %v535 = vld [vmem:[%s1 + $0x358] sm:$0xff]
      %v536 = vld [vmem:[%s1 + $0x360] sm:$0xff]
      %v537 = vld [vmem:[%s1 + $0x368] sm:$0xff]
      %v538 = vld [vmem:[%s1 + $0x370] sm:$0xff]
      %v539 = vld [vmem:[%s1 + $0x378] sm:$0xff]
      %v540 = vld [vmem:[%s1 + $0x380] sm:$0xff]
      %v541 = vld [vmem:[%s1 + $0x388] sm:$0xff]
      %v542 = vld [vmem:[%s1 + $0x390] sm:$0xff]
      %v543 = vld [vmem:[%s1 + $0x398] sm:$0xff]
      %v544 = vld [vmem:[%s1 + $0x3a0] sm:$0xff]
      %v545 = vld [vmem:[%s1 + $0x3a8] sm:$0xff]
      %v546 = vld [vmem:[%s1 + $0x3b0] sm:$0xff]
      %v547 = vld [vmem:[%s1 + $0x3b8] sm:$0xff]
      %v548 = vld [vmem:[%s1 + $0x3c0] sm:$0xff]
      %v549 = vld [vmem:[%s1 + $0x3c8] sm:$0xff]
      %v550 = vld [vmem:[%s1 + $0x3d0] sm:$0xff]
      %v551 = vld [vmem:[%s1 + $0x3d8] sm:$0xff]
      %v552 = vld [vmem:[%s1 + $0x3e0] sm:$0xff]
      %v553 = vld [vmem:[%s1 + $0x3e8] sm:$0xff]
      %v554 = vld [vmem:[%s1 + $0x3f0] sm:$0xff]
      %v555 = vld [vmem:[%s1 + $0x3f8] sm:$0xff]
      %v556 = vld [vmem:[%s2] sm:$0x1]
      %v558 = vperm.slane %v427, 0
      %v559 = vperm.slane %v427, 1
      %v560 = vperm.slane %v427, 2
      %v561 = vperm.slane %v427, 3
      %v562 = vperm.slane %v427, 4
      %v563 = vperm.slane %v427, 5
      %v564 = vperm.slane %v427, 6
      %v565 = vperm.slane %v427, 7
      %574 = vmatpush.msra.mxu0 %v443
      %575 = vmatpush.msra.mxu0 %v442
      %576 = vmatpush.msra.mxu0 %v441
      %577 = vmatpush.msra.mxu0 %v440
      %578 = vmatpush.msra.mxu0 %v439
      %579 = vmatpush.msra.mxu0 %v438
      %580 = vmatpush.msra.mxu0 %v437
      %581 = vmatpush.msra.mxu0 %v436
      %582 = vmatpush.msra.mxu0 %v435
      %583 = vmatpush.msra.mxu0 %v434
      %584 = vmatpush.msra.mxu0 %v433
      %585 = vmatpush.msra.mxu0 %v432
      %586 = vmatpush.msra.mxu0 %v431
      %587 = vmatpush.msra.mxu0 %v430
      %588 = vmatpush.msra.mxu0 %v429
      %589 = vmatpush.msra.mxu0 %v428
      %590 = vmatmul.f32.gmra.mxu0 %v558
      %v591 = vpop.f32.mrf.mxu0
      %v592 = vadd.f32 %v556, %v591
      %593 = vdwg.mxu0
      %594 = vmatpush.msra.mxu0 %v459
      %595 = vmatpush.msra.mxu0 %v458
      %596 = vmatpush.msra.mxu0 %v457
      %597 = vmatpush.msra.mxu0 %v456
      %598 = vmatpush.msra.mxu0 %v455
      %599 = vmatpush.msra.mxu0 %v454
      %600 = vmatpush.msra.mxu0 %v453
      %601 = vmatpush.msra.mxu0 %v452
      %602 = vmatpush.msra.mxu0 %v451
      %603 = vmatpush.msra.mxu0 %v450
      %604 = vmatpush.msra.mxu0 %v449
      %605 = vmatpush.msra.mxu0 %v448
      %606 = vmatpush.msra.mxu0 %v447
      %607 = vmatpush.msra.mxu0 %v446
      %608 = vmatpush.msra.mxu0 %v445
      %609 = vmatpush.msra.mxu0 %v444
      %610 = vmatmul.f32.gmra.mxu0 %v559
      %v611 = vpop.f32.mrf.mxu0
      %v612 = vadd.f32 %v592, %v611
      %613 = vdwg.mxu0
      %614 = vmatpush.msra.mxu0 %v475
      %615 = vmatpush.msra.mxu0 %v474
      %616 = vmatpush.msra.mxu0 %v473
      %617 = vmatpush.msra.mxu0 %v472
      %618 = vmatpush.msra.mxu0 %v471
      %619 = vmatpush.msra.mxu0 %v470
      %620 = vmatpush.msra.mxu0 %v469
      %621 = vmatpush.msra.mxu0 %v468
      %622 = vmatpush.msra.mxu0 %v467
      %623 = vmatpush.msra.mxu0 %v466
      %624 = vmatpush.msra.mxu0 %v465
      %625 = vmatpush.msra.mxu0 %v464
      %626 = vmatpush.msra.mxu0 %v463
      %627 = vmatpush.msra.mxu0 %v462
      %628 = vmatpush.msra.mxu0 %v461
      %629 = vmatpush.msra.mxu0 %v460
      %630 = vmatmul.f32.gmra.mxu0 %v560
      %v631 = vpop.f32.mrf.mxu0
      %v632 = vadd.f32 %v612, %v631
      %633 = vdwg.mxu0
      %634 = vmatpush.msra.mxu0 %v491
      %635 = vmatpush.msra.mxu0 %v490
      %636 = vmatpush.msra.mxu0 %v489
      %637 = vmatpush.msra.mxu0 %v488
      %638 = vmatpush.msra.mxu0 %v487
      %639 = vmatpush.msra.mxu0 %v486
      %640 = vmatpush.msra.mxu0 %v485
      %641 = vmatpush.msra.mxu0 %v484
      %642 = vmatpush.msra.mxu0 %v483
      %643 = vmatpush.msra.mxu0 %v482
      %644 = vmatpush.msra.mxu0 %v481
      %645 = vmatpush.msra.mxu0 %v480
      %646 = vmatpush.msra.mxu0 %v479
      %647 = vmatpush.msra.mxu0 %v478
      %648 = vmatpush.msra.mxu0 %v477
      %649 = vmatpush.msra.mxu0 %v476
      %650 = vmatmul.f32.gmra.mxu0 %v561
      %v651 = vpop.f32.mrf.mxu0
      %v652 = vadd.f32 %v632, %v651
      %653 = vdwg.mxu0
      %654 = vmatpush.msra.mxu0 %v507
      %655 = vmatpush.msra.mxu0 %v506
      %656 = vmatpush.msra.mxu0 %v505
      %657 = vmatpush.msra.mxu0 %v504
      %658 = vmatpush.msra.mxu0 %v503
      %659 = vmatpush.msra.mxu0 %v502
      %660 = vmatpush.msra.mxu0 %v501
      %661 = vmatpush.msra.mxu0 %v500
      %662 = vmatpush.msra.mxu0 %v499
      %663 = vmatpush.msra.mxu0 %v498
      %664 = vmatpush.msra.mxu0 %v497
      %665 = vmatpush.msra.mxu0 %v496
      %666 = vmatpush.msra.mxu0 %v495
      %667 = vmatpush.msra.mxu0 %v494
      %668 = vmatpush.msra.mxu0 %v493
      %669 = vmatpush.msra.mxu0 %v492
      %670 = vmatmul.f32.gmra.mxu0 %v562
      %v671 = vpop.f32.mrf.mxu0
      %v672 = vadd.f32 %v652, %v671
      %673 = vdwg.mxu0
      %674 = vmatpush.msra.mxu0 %v523
      %675 = vmatpush.msra.mxu0 %v522
      %676 = vmatpush.msra.mxu0 %v521
      %677 = vmatpush.msra.mxu0 %v520
      %678 = vmatpush.msra.mxu0 %v519
      %679 = vmatpush.msra.mxu0 %v518
      %680 = vmatpush.msra.mxu0 %v517
      %681 = vmatpush.msra.mxu0 %v516
      %682 = vmatpush.msra.mxu0 %v515
      %683 = vmatpush.msra.mxu0 %v514
      %684 = vmatpush.msra.mxu0 %v513
      %685 = vmatpush.msra.mxu0 %v512
      %686 = vmatpush.msra.mxu0 %v511
      %687 = vmatpush.msra.mxu0 %v510
      %688 = vmatpush.msra.mxu0 %v509
      %689 = vmatpush.msra.mxu0 %v508
      %690 = vmatmul.f32.gmra.mxu0 %v563
      %v691 = vpop.f32.mrf.mxu0
      %v692 = vadd.f32 %v672, %v691
      %693 = vdwg.mxu0
      %694 = vmatpush.msra.mxu0 %v539
      %695 = vmatpush.msra.mxu0 %v538
      %696 = vmatpush.msra.mxu0 %v537
      %697 = vmatpush.msra.mxu0 %v536
      %698 = vmatpush.msra.mxu0 %v535
      %699 = vmatpush.msra.mxu0 %v534
      %700 = vmatpush.msra.mxu0 %v533
      %701 = vmatpush.msra.mxu0 %v532
      %702 = vmatpush.msra.mxu0 %v531
      %703 = vmatpush.msra.mxu0 %v530
      %704 = vmatpush.msra.mxu0 %v529
      %705 = vmatpush.msra.mxu0 %v528
      %706 = vmatpush.msra.mxu0 %v527
      %707 = vmatpush.msra.mxu0 %v526
      %708 = vmatpush.msra.mxu0 %v525
      %709 = vmatpush.msra.mxu0 %v524
      %710 = vmatmul.f32.gmra.mxu0 %v564
      %v711 = vpop.f32.mrf.mxu0
      %v712 = vadd.f32 %v692, %v711
      %713 = vdwg.mxu0
      %714 = vmatpush.msra.mxu0 %v555
      %715 = vmatpush.msra.mxu0 %v554
      %716 = vmatpush.msra.mxu0 %v553
      %717 = vmatpush.msra.mxu0 %v552
      %718 = vmatpush.msra.mxu0 %v551
      %719 = vmatpush.msra.mxu0 %v550
      %720 = vmatpush.msra.mxu0 %v549
      %721 = vmatpush.msra.mxu0 %v548
      %722 = vmatpush.msra.mxu0 %v547
      %723 = vmatpush.msra.mxu0 %v546
      %724 = vmatpush.msra.mxu0 %v545
      %725 = vmatpush.msra.mxu0 %v544
      %726 = vmatpush.msra.mxu0 %v543
      %727 = vmatpush.msra.mxu0 %v542
      %728 = vmatpush.msra.mxu0 %v541
      %729 = vmatpush.msra.mxu0 %v540
      %730 = vmatmul.f32.gmra.mxu0 %v565
      %v731 = vpop.f32.mrf.mxu0
      %v732 = vadd.f32 %v712, %v731
      %733 = vdwg.mxu0
      %v734 = vmax.f32 %v732, 0.0
      %v735 = vld [vmem:[%s3] sm:$0xff]
      %v736 = vld [vmem:[%s3 + $0x8] sm:$0xff]
      %v737 = vld [vmem:[%s3 + $0x10] sm:$0xff]
      %v738 = vld [vmem:[%s3 + $0x18] sm:$0xff]
      %v739 = vld [vmem:[%s3 + $0x20] sm:$0xff]
      %v740 = vld [vmem:[%s3 + $0x28] sm:$0xff]
      %v741 = vld [vmem:[%s3 + $0x30] sm:$0xff]
      %v742 = vld [vmem:[%s3 + $0x38] sm:$0xff]
      %v743 = vld [vmem:[%s3 + $0x40] sm:$0xff]
      %v744 = vld [vmem:[%s3 + $0x48] sm:$0xff]
      %v745 = vld [vmem:[%s3 + $0x50] sm:$0xff]
      %v746 = vld [vmem:[%s3 + $0x58] sm:$0xff]
      %v747 = vld [vmem:[%s3 + $0x60] sm:$0xff]
      %v748 = vld [vmem:[%s3 + $0x68] sm:$0xff]
      %v749 = vld [vmem:[%s3 + $0x70] sm:$0xff]
      %v750 = vld [vmem:[%s3 + $0x78] sm:$0xff]
      %v751 = vld [vmem:[%s3 + $0x80] sm:$0xff]
      %v752 = vld [vmem:[%s3 + $0x88] sm:$0xff]
      %v753 = vld [vmem:[%s3 + $0x90] sm:$0xff]
      %v754 = vld [vmem:[%s3 + $0x98] sm:$0xff]
      %v755 = vld [vmem:[%s3 + $0xa0] sm:$0xff]
      %v756 = vld [vmem:[%s3 + $0xa8] sm:$0xff]
      %v757 = vld [vmem:[%s3 + $0xb0] sm:$0xff]
      %v758 = vld [vmem:[%s3 + $0xb8] sm:$0xff]
      %v759 = vld [vmem:[%s3 + $0xc0] sm:$0xff]
      %v760 = vld [vmem:[%s3 + $0xc8] sm:$0xff]
      %v761 = vld [vmem:[%s3 + $0xd0] sm:$0xff]
      %v762 = vld [vmem:[%s3 + $0xd8] sm:$0xff]
      %v763 = vld [vmem:[%s3 + $0xe0] sm:$0xff]
      %v764 = vld [vmem:[%s3 + $0xe8] sm:$0xff]
      %v765 = vld [vmem:[%s3 + $0xf0] sm:$0xff]
      %v766 = vld [vmem:[%s3 + $0xf8] sm:$0xff]
      %v767 = vld [vmem:[%s4] sm:$0xf]
      %v769 = vperm.slane %v767, 0
      %v770 = vperm.slane %v767, 1
      %v771 = vperm.slane %v767, 2
      %v772 = vperm.slane %v767, 3
      %vm777 = vcmask 523264
      %v779 = vsel %vm777, %v734, 0
      %781 = vmatpush.msra.mxu0 0.0
      %782 = vmatpush.msra.mxu0 0.0
      %783 = vmatpush.msra.mxu0 0.0
      %784 = vmatpush.msra.mxu0 0.0
      %785 = vmatpush.msra.mxu0 0.0
      %786 = vmatpush.msra.mxu0 0.0
      %787 = vmatpush.msra.mxu0 0.0
      %788 = vmatpush.msra.mxu0 0.0
      %789 = vmatpush.msra.mxu0 %v763
      %790 = vmatpush.msra.mxu0 %v759
      %791 = vmatpush.msra.mxu0 %v755
      %792 = vmatpush.msra.mxu0 %v751
      %793 = vmatpush.msra.mxu0 %v747
      %794 = vmatpush.msra.mxu0 %v743
      %795 = vmatpush.msra.mxu0 %v739
      %796 = vmatpush.msra.mxu0 %v735
      %797 = vmatmul.f32.gmra.mxu0 %v779
      %v798 = vpop.f32.mrf.mxu0
      %v799 = vadd.f32 %v769, %v798
      %800 = vdwg.mxu0
      %801 = vmatpush.msra.mxu0 0.0
      %802 = vmatpush.msra.mxu0 0.0
      %803 = vmatpush.msra.mxu0 0.0
      %804 = vmatpush.msra.mxu0 0.0
      %805 = vmatpush.msra.mxu0 0.0
      %806 = vmatpush.msra.mxu0 0.0
      %807 = vmatpush.msra.mxu0 0.0
      %808 = vmatpush.msra.mxu0 0.0
      %809 = vmatpush.msra.mxu0 %v764
      %810 = vmatpush.msra.mxu0 %v760
      %811 = vmatpush.msra.mxu0 %v756
      %812 = vmatpush.msra.mxu0 %v752
      %813 = vmatpush.msra.mxu0 %v748
      %814 = vmatpush.msra.mxu0 %v744
      %815 = vmatpush.msra.mxu0 %v740
      %816 = vmatpush.msra.mxu0 %v736
      %817 = vmatmul.f32.gmra.mxu0 %v779
      %v818 = vpop.f32.mrf.mxu0
      %v819 = vadd.f32 %v770, %v818
      %820 = vdwg.mxu0
      %821 = vmatpush.msra.mxu0 0.0
      %822 = vmatpush.msra.mxu0 0.0
      %823 = vmatpush.msra.mxu0 0.0
      %824 = vmatpush.msra.mxu0 0.0
      %825 = vmatpush.msra.mxu0 0.0
      %826 = vmatpush.msra.mxu0 0.0
      %827 = vmatpush.msra.mxu0 0.0
      %828 = vmatpush.msra.mxu0 0.0
      %829 = vmatpush.msra.mxu0 %v765
      %830 = vmatpush.msra.mxu0 %v761
      %831 = vmatpush.msra.mxu0 %v757
      %832 = vmatpush.msra.mxu0 %v753
      %833 = vmatpush.msra.mxu0 %v749
      %834 = vmatpush.msra.mxu0 %v745
      %835 = vmatpush.msra.mxu0 %v741
      %836 = vmatpush.msra.mxu0 %v737
      %837 = vmatmul.f32.gmra.mxu0 %v779
      %v838 = vpop.f32.mrf.mxu0
      %v839 = vadd.f32 %v771, %v838
      %840 = vdwg.mxu0
      %841 = vmatpush.msra.mxu0 0.0
      %842 = vmatpush.msra.mxu0 0.0
      %843 = vmatpush.msra.mxu0 0.0
      %844 = vmatpush.msra.mxu0 0.0
      %845 = vmatpush.msra.mxu0 0.0
      %846 = vmatpush.msra.mxu0 0.0
      %847 = vmatpush.msra.mxu0 0.0
      %848 = vmatpush.msra.mxu0 0.0
      %849 = vmatpush.msra.mxu0 %v766
      %850 = vmatpush.msra.mxu0 %v762
      %851 = vmatpush.msra.mxu0 %v758
      %852 = vmatpush.msra.mxu0 %v754
      %853 = vmatpush.msra.mxu0 %v750
      %854 = vmatpush.msra.mxu0 %v746
      %855 = vmatpush.msra.mxu0 %v742
      %856 = vmatpush.msra.mxu0 %v738
      %857 = vmatmul.f32.gmra.mxu0 %v779
      %v858 = vpop.f32.mrf.mxu0
      %v859 = vadd.f32 %v772, %v858
      %860 = vdwg.mxu0
      %v861 = vld [vmem:[%s5] sm:$0xff]
      %v862 = vld [vmem:[%s5 + $0x8] sm:$0xff]
      %v863 = vperm.slane %v799, 0
      %v864 = vperm.slane %v819, 0
      %v865 = vperm.slane %v839, 0
      %v866 = vperm.slane %v859, 0
      %v871 = vrot.slane %v864, 4
      %v872 = vrot.slane %v866, 4
      %vm873 = vcmask 1043456
      %v874 = vsel %vm873, %v863, %v871
      %v875 = vsel %vm873, %v865, %v872
      %v878 = vadd.f32 %v861, %v874
      %v879 = vadd.f32 %v862, %v875
      %882 = vst [vmem:[#allocation1] ss:$2 sm:$0xff] %v878
      %s883 = scalar_lea.vmem [#allocation1], 16
      %884 = vst [vmem:[%s883] ss:$2 sm:$0xff] %v879
      %v885 = vld.sshfl [vmem:[#allocation1] sm:$0xff pattern:$0x75316420]
      %v886 = vld.sshfl [vmem:[#allocation1 + $0x8] sm:$0xff pattern:$0x75316420]
      %v887 = vld.sshfl [vmem:[#allocation1 + $0x10] sm:$0xff pattern:$0x75316420]
      %v888 = vld.sshfl [vmem:[#allocation1 + $0x18] sm:$0xff pattern:$0x75316420]
      %s889 = scalar_lea.vmem [#allocation1], 32
      %890 = vst [vmem:[%s889] ss:$2 sm:$0xff] %v878
      %s891 = scalar_lea.vmem [#allocation1], 48
      %892 = vst [vmem:[%s891] ss:$2 sm:$0xff] %v879
      %v893 = vld.sshfl [vmem:[#allocation1 + $0x20] sm:$0xff pattern:$0x75316420]
      %v894 = vld.sshfl [vmem:[#allocation1 + $0x28] sm:$0xff pattern:$0x75316420]
      %v895 = vld.sshfl [vmem:[#allocation1 + $0x30] sm:$0xff pattern:$0x75316420]
      %v896 = vld.sshfl [vmem:[#allocation1 + $0x38] sm:$0xff pattern:$0x75316420]
      %v897 = vrot.slane %v885, 7
      %v898 = vrot.slane %v886, 7
      %v899 = vrot.slane %v887, 7
      %v900 = vrot.slane %v888, 7
      %v901 = vrot.slane %v893, 7
      %v902 = vrot.slane %v894, 7
      %v903 = vrot.slane %v895, 7
      %v904 = vrot.slane %v896, 7
      %913 = vst [vmem:[%s258] sm:$0x1e] %v897
      %914 = vst [vmem:[%s258 + $0x8] sm:$0x1e] %v898
      %915 = vst [vmem:[%s258 + $0x10] sm:$0x1e] %v899
      %916 = vst [vmem:[%s258 + $0x18] sm:$0x1e] %v900
      %917 = vst [vmem:[%s258 + $0x140] sm:$0x1e] %v901
      %918 = vst [vmem:[%s258 + $0x148] sm:$0x1e] %v902
      %919 = vst [vmem:[%s258 + $0x150] sm:$0x1e] %v903
      %920 = vst [vmem:[%s258 + $0x158] sm:$0x1e] %v904
      %p921 = scmp.lt.s32.totalorder %s18, 1
      %s922 = scalar_select %p921, %s18, 1
      %s923 = smul.addr %s922, 80
      %s924 = smul.addr %s923, 8
      %s925 = scalar_lea.vmem %s7, %s924
      // Predicated region
      $region49: #{tpu_custom_call.1} parent=47 // pred_check
        %p926 = pneg %p183
      $region50: #{tpu_custom_call.1} parent=47 // pred_check_branch
        %928 = sbr.rel (%p926) target = $region52
      $region51: #{tpu_custom_call.1} parent=47 // pred_region
        _
      $region52: #{tpu_custom_call.1} parent=47 // pred_fallthru
        _
    $region48: #{tpu_custom_call.1} parent=5 // pred_fallthru
      _
    %p929 = scmp.le.s32.totalorder 2, %s13
    // Predicated region
    $region53: #{tpu_custom_call.1} parent=5 // pred_check
      %p930 = pneg %p929
    $region54: #{tpu_custom_call.1} parent=5 // pred_check_branch
      %932 = sbr.rel (%p930) target = $region56
    $region55: #{tpu_custom_call.1} parent=5 // pred_region
      %s933 = ssub.s32 %s13, 2
      // Predicated region
      $region57: #{tpu_custom_call.1} parent=55 // pred_check
        %p934 = pneg %p189
      $region58: #{tpu_custom_call.1} parent=55 // pred_check_branch
        %936 = sbr.rel (%p934) target = $region60
      $region59: #{tpu_custom_call.1} parent=55 // pred_region
        %p937 = scmp.lt.s32.totalorder %s19, 1
        %s938 = scalar_select %p937, %s19, 1
        %s939 = smul.addr %s938, 80
        %s940 = smul.addr %s939, 8
        %s941 = scalar_lea.vmem %s7, %s940
      $region60: #{tpu_custom_call.1} parent=55 // pred_fallthru
        _
    $region56: #{tpu_custom_call.1} parent=5 // pred_fallthru
      _
  $region6: #{tpu_custom_call.1} parent=0 // loop_footer
    %s17 = sadd.s32 1, %s13
  $region7: #{tpu_custom_call.1} parent=0 // loop_footer_branch
    %12 = sbr.rel target = $region3
  $region8: #{tpu_custom_call.1} parent=0 // loop_exit
    _

</llo_original>
